<compile_context>
chip_gen: v7x
topology: tpu7x:2x2x1
jax: 0.10.0
libtpu: 0.0.40
codegen_flags: <defaults>
</compile_context>

<pallas_src>
import jax
import jax.numpy as jnp
from jax.experimental import pallas as pl
from jax.experimental.pallas import tpu as pltpu


def _round_up(x, m):
    return (x + m - 1) // m * m


def _cdiv(a, b):
    return (a + b - 1) // b


def _vmem_capacity_bytes():
    try:
        return int(pltpu.get_tpu_info().vmem_capacity_bytes)
    except Exception:
        return 64 * 1024 * 1024  # conservative: v7x per-TC VMEM


def _pad_plan(feat_dim, num_classes):
    """Padded dims + K/class tile sizes (functions of F, C only)."""
    # Contraction dim: multiple of 256 (full MXU passes on v6e/v7x; also a
    # multiple of 128 so v5e is fine), tiled at <= 2048 so the f32 x block
    # stays <= 4 MiB.
    f0 = _round_up(feat_dim, 256)
    k_tiles = _cdiv(f0, 2048)
    tk = _round_up(_cdiv(f0, k_tiles), 256)
    f_pad = k_tiles * tk
    # Class dim: lane-dense 128-multiple tiles; force >= 2 class tiles when
    # possible so the "parallel" class axis shards across both v7x TensorCores
    # and weight DMA pipelines against compute.
    c0 = _round_up(num_classes, 128)
    c_tiles = max(2, _cdiv(c0, 512)) if c0 >= 256 else 1
    tc = _round_up(_cdiv(c0, c_tiles), 128)
    c_pad = c_tiles * tc
    return f_pad, c_pad, tk, tc


def _linear_kernel(x_ref, w_ref, b_ref, o_ref, acc_ref):
    k = pl.program_id(2)

    @pl.when(k == 0)
    def _init():
        acc_ref[...] = jnp.zeros_like(acc_ref)

    # In-kernel cast of f32 activations to the weight's compute dtype (cheap
    # VPU work hidden under the MXU) -- no wrapper-side cast round trip.
    acc_ref[...] += jnp.dot(x_ref[...].astype(w_ref.dtype), w_ref[...],
                            preferred_element_type=jnp.float32)

    @pl.when(k == pl.num_programs(2) - 1)
    def _finalize():
        o_ref[...] = (acc_ref[...] + b_ref[...]).astype(o_ref.dtype)


def image_classifier_linear(x, w_p, b_p, num_classes):
    """logits = x @ W.T + b using pre-padded weights.

    x:   (N, F)           float32 activations
    w_p: (F_pad, C_pad)   compute-dtype padded W.T (built once at init)
    b_p: (1, C_pad)       float32 padded bias      (built once at init)
    """
    N, F = x.shape
    F_pad, C_pad = w_p.shape
    f_pad, c_pad, tk, tc = _pad_plan(F, num_classes)
    assert (f_pad, c_pad) == (F_pad, C_pad), "weight padding plan mismatch"
    assert b_p.shape == (1, C_pad)

    out_dtype = x.dtype
    x_bytes = jnp.dtype(x.dtype).itemsize
    w_bytes = jnp.dtype(w_p.dtype).itemsize
    o_bytes = jnp.dtype(out_dtype).itemsize

    # Batch tile: round to the f32 sublane quantum (8) for small N, cap at 512,
    # and balance tiles so padding waste stays small.
    n_r = _round_up(N, 8)
    n_tiles = _cdiv(n_r, 512)
    bm = _round_up(_cdiv(n_r, n_tiles), 8)
    N_pad = n_tiles * bm

    # Pad x only if its shape needs alignment (f32 -> f32, no dtype round trip).
    if (N_pad, F_pad) != (N, F):
        x_p = jnp.zeros((N_pad, F_pad), x.dtype).at[:N, :F].set(x)
    else:
        x_p = x

    grid = (N_pad // bm, C_pad // tc, F_pad // tk)

    # Generation-aware VMEM budget: double-buffered x/W/bias/out blocks + f32
    # accumulator scratch + headroom, capped at this chip's VMEM capacity.
    working = (2 * (bm * tk * x_bytes + tk * tc * w_bytes + bm * tc * o_bytes)
               + 2 * tc * 4 + bm * tc * 4)
    cap = _vmem_capacity_bytes()
    vmem_limit = int(min(cap, max(32 * 1024 * 1024,
                                  working + 16 * 1024 * 1024)))

    cost = pl.CostEstimate(
        flops=2 * N * F * num_classes,
        transcendentals=0,
        bytes_accessed=(N * F * x_bytes + F * num_classes * w_bytes
                        + num_classes * 4 + N * num_classes * o_bytes),
    )

    out_p = pl.pallas_call(
        _linear_kernel,
        out_shape=jax.ShapeDtypeStruct((N_pad, C_pad), out_dtype),
        grid_spec=pltpu.PrefetchScalarGridSpec(
            num_scalar_prefetch=0,
            grid=grid,
            in_specs=[
                pl.BlockSpec((bm, tk), lambda i, j, k: (i, k)),   # x batch/K tile
                pl.BlockSpec((tk, tc), lambda i, j, k: (k, j)),   # W.T K/class tile
                pl.BlockSpec((1, tc), lambda i, j, k: (0, j)),    # bias class tile
            ],
            out_specs=pl.BlockSpec((bm, tc), lambda i, j, k: (i, j)),
            scratch_shapes=[pltpu.VMEM((bm, tc), jnp.float32)],
        ),
        compiler_params=pltpu.CompilerParams(
            dimension_semantics=("parallel", "parallel", "arbitrary"),
            vmem_limit_bytes=vmem_limit,
        ),
        cost_estimate=cost,
    )(x_p, w_p, b_p)

    return out_p[:N, :num_classes]


class ImageClassifierPallas:
    """JAX/Pallas port of ImageClassifier with P['arch'] == 'linear'."""

    def __init__(self, feat_dim, num_classes, key, compute_dtype=jnp.bfloat16):
        self.feat_dim = feat_dim
        self.num_classes = num_classes
        kw, kb = jax.random.split(key)
        # Deterministic init mimicking torch.nn.Linear uniform(-1/sqrt(F), 1/sqrt(F)).
        bound = 1.0 / (feat_dim ** 0.5)
        # Stored as (feat_dim, num_classes) == W.T relative to PyTorch.
        self.w_t = jax.random.uniform(
            kw, (feat_dim, num_classes), jnp.float32, -bound, bound)
        self.b = jax.random.uniform(
            kb, (1, num_classes), jnp.float32, -bound, bound)

        # Precompute padded compute-dtype weight / f32 bias ONCE (not per call).
        F_pad, C_pad, _, _ = _pad_plan(feat_dim, num_classes)
        self.w_p = jnp.zeros((F_pad, C_pad), compute_dtype).at[
            :feat_dim, :num_classes].set(self.w_t.astype(compute_dtype))
        self.b_p = jnp.zeros((1, C_pad), jnp.float32).at[
            :, :num_classes].set(self.b.astype(jnp.float32))

    def __call__(self, x):
        return image_classifier_linear(x, self.w_p, self.b_p, self.num_classes)


if __name__ == "__main__":
    key = jax.random.PRNGKey(0)
    k_x, k_params = jax.random.split(key)

    batch, feat_dim, num_classes = 8, 32, 16
    x = jax.random.normal(k_x, (batch, feat_dim), dtype=jnp.float32)

    model = ImageClassifierPallas(feat_dim, num_classes, k_params)
    logits = jax.block_until_ready(model(x))
    assert logits.shape == (batch, num_classes)

    # Reference with the same bf16 rounding of x/W as the kernel (f32 accumulate).
    x_bf = x.astype(jnp.bfloat16).astype(jnp.float32)
    w_bf = model.w_t.astype(jnp.bfloat16).astype(jnp.float32)
    ref_bf16 = x_bf @ w_bf + model.b
    assert jnp.allclose(logits, ref_bf16, atol=2e-3, rtol=2e-3)

    # Loose sanity check against the pure-f32 PyTorch-equivalent forward.
    ref_f32 = x @ model.w_t + model.b
    assert jnp.allclose(logits, ref_f32, atol=5e-2, rtol=5e-2)

    print("KERNEL_OK")
</pallas_src>

<mosaic_0001>
module attributes {stable_mosaic.version = 11 : i64} {
  func.func @_linear_kernel(%arg0: i32, %arg1: i32, %arg2: i32, %arg3: memref<8x256xf32, #tpu.memory_space<vmem>>, %arg4: memref<256x128xbf16, #tpu.memory_space<vmem>>, %arg5: memref<1x128xf32, #tpu.memory_space<vmem>>, %arg6: memref<8x128xf32, #tpu.memory_space<vmem>>, %arg7: memref<8x128xf32, #tpu.memory_space<vmem>>) attributes {dimension_semantics = [#tpu.dimension_semantics<parallel>, #tpu.dimension_semantics<parallel>, #tpu.dimension_semantics<arbitrary>], iteration_bounds = array<i64: 1, 1, 1>, scalar_prefetch = 0 : i64, scratch_operands = 1 : i64, tpu.core_type = #tpu.core_type<tc>, window_params = [{transform_indices = @transform_0, window_bounds = array<i64: 8, 256>}, {transform_indices = @transform_1, window_bounds = array<i64: 256, 128>}, {transform_indices = @transform_2, window_bounds = array<i64: 1, 128>}, {transform_indices = @transform_3, window_bounds = array<i64: 8, 128>}]} {
    %c0_i32 = arith.constant 0 : i32
    %0 = arith.cmpi eq, %arg2, %c0_i32 : i32
    %1 = arith.extui %0 : i1 to i32
    %c0_i32_0 = arith.constant 0 : i32
    %2 = arith.cmpi ne, %1, %c0_i32_0 : i32
    scf.if %2 {
      %cst_10 = arith.constant 0.000000e+00 : f32
      %13 = vector.broadcast %cst_10 : f32 to vector<8x128xf32>
      %c0_11 = arith.constant 0 : index
      %c0_12 = arith.constant 0 : index
      %14 = vector.load %arg7[%c0_11, %c0_12] : memref<8x128xf32, #tpu.memory_space<vmem>>, vector<8x128xf32>
      tpu.vector_store %arg7[%c0_11, %c0_12], %13 {strides = array<i32>} : memref<8x128xf32, #tpu.memory_space<vmem>>, vector<8x128xf32>,
    } else {
    }
    %c0 = arith.constant 0 : index
    %c0_1 = arith.constant 0 : index
    %3 = vector.load %arg7[%c0, %c0_1] : memref<8x128xf32, #tpu.memory_space<vmem>>, vector<8x128xf32>
    %c0_2 = arith.constant 0 : index
    %c0_3 = arith.constant 0 : index
    %4 = vector.load %arg3[%c0_2, %c0_3] : memref<8x256xf32, #tpu.memory_space<vmem>>, vector<8x256xf32>
    %5 = arith.truncf %4 : vector<8x256xf32> to vector<8x256xbf16>
    %c0_4 = arith.constant 0 : index
    %c0_5 = arith.constant 0 : index
    %6 = vector.load %arg4[%c0_4, %c0_5] : memref<256x128xbf16, #tpu.memory_space<vmem>>, vector<256x128xbf16>
    %cst = arith.constant dense<0.000000e+00> : vector<8x128xf32>
    %7 = tpu.matmul %5, %6, %cst {dimension_numbers = #tpu.dot_dimension_numbers<[1], [0], [0], [1], [0, 0, 1, 1], [], []>} : vector<8x256xbf16>, vector<256x128xbf16>, vector<8x128xf32> -> vector<8x128xf32>
    %8 = arith.addf %3, %7 : vector<8x128xf32>
    %c0_6 = arith.constant 0 : index
    %c0_7 = arith.constant 0 : index
    %9 = vector.load %arg7[%c0_6, %c0_7] : memref<8x128xf32, #tpu.memory_space<vmem>>, vector<8x128xf32>
    tpu.vector_store %arg7[%c0_6, %c0_7], %8 {strides = array<i32>} : memref<8x128xf32, #tpu.memory_space<vmem>>, vector<8x128xf32>,
    %c0_i32_8 = arith.constant 0 : i32
    %10 = arith.cmpi eq, %arg2, %c0_i32_8 : i32
    %11 = arith.extui %10 : i1 to i32
    %c0_i32_9 = arith.constant 0 : i32
    %12 = arith.cmpi ne, %11, %c0_i32_9 : i32
    scf.if %12 {
      %c0_10 = arith.constant 0 : index
      %c0_11 = arith.constant 0 : index
      %13 = vector.load %arg7[%c0_10, %c0_11] : memref<8x128xf32, #tpu.memory_space<vmem>>, vector<8x128xf32>
      %c0_12 = arith.constant 0 : index
      %c0_13 = arith.constant 0 : index
      %14 = vector.load %arg5[%c0_12, %c0_13] : memref<1x128xf32, #tpu.memory_space<vmem>>, vector<1x128xf32>
      %15 = vector.broadcast %14 : vector<1x128xf32> to vector<8x128xf32>
      %16 = arith.addf %13, %15 : vector<8x128xf32>
      %c0_14 = arith.constant 0 : index
      %c0_15 = arith.constant 0 : index
      %17 = vector.load %arg6[%c0_14, %c0_15] : memref<8x128xf32, #tpu.memory_space<vmem>>, vector<8x128xf32>
      tpu.vector_store %arg6[%c0_14, %c0_15], %16 {strides = array<i32>} : memref<8x128xf32, #tpu.memory_space<vmem>>, vector<8x128xf32>,
    } else {
    }
    return
  }
  func.func @transform_0(%arg0: i32, %arg1: i32, %arg2: i32) -> (i32, i32) {
    %c0_i32 = arith.constant 0 : i32
    return %arg0, %arg2 : i32, i32
  }
  func.func @transform_1(%arg0: i32, %arg1: i32, %arg2: i32) -> (i32, i32) {
    %c0_i32 = arith.constant 0 : i32
    return %arg2, %arg1 : i32, i32
  }
  func.func @transform_2(%arg0: i32, %arg1: i32, %arg2: i32) -> (i32, i32) {
    %c0_i32 = arith.constant 0 : i32
    %c0_i32_0 = arith.constant 0 : i32
    return %c0_i32, %arg1 : i32, i32
  }
  func.func @transform_3(%arg0: i32, %arg1: i32, %arg2: i32) -> (i32, i32) {
    %c0_i32 = arith.constant 0 : i32
    return %arg0, %arg1 : i32, i32
  }
}

</mosaic_0001>

<llo_original>
// kernel: tpu_custom_call.1
$region0: #{tpu_custom_call.1}
  #allocation0 [shape = 'u32[]', space=smem, size = 0x4, offset = 0x4, fixed_abs, tag = 'smem constant byte address 0x4 - core index']
  #allocation1 [shape = 'u32[144,128]{1,0:T(1,128)}', space=vmem, size = 0x12000, scoped, tag = 'internal scratch']
  #allocation2 [shape = 'f32[8,128]{1,0:T(8,128)}', space=vmem, size = 0x1000, scoped, tag = 'scratch operand']
  %s0 = inlined_call_operand.hbm [shape: f32[8,256], index: 0, kind: input, shape index: {}]
  %s1 = inlined_call_operand.hbm [shape: bf16[256,128], index: 1, kind: input, shape index: {}]
  %s2 = inlined_call_operand.vmem [shape: f32[1,128], index: 2, kind: input, shape index: {}]
  %s3 = inlined_call_operand.hbm [shape: f32[8,128], index: 3, kind: output, shape index: {}]
  %s4 = sld [smem:[#allocation0]]
  $region38: #{tpu_custom_call.1} parent=0
    _
  %s6 = ssub.s32 1, %s4
  %s7 = scalar_select 0, %s6, %s4
  $region1: #{tpu_custom_call.1} parent=0
    #allocation3 [shape = 'u8[8192]{0}', space=vmem, size = 0x2000, scoped, tag = 'input window, operand 0, single buffered']
    #allocation4 [shape = 's32[1]{0}', space=sflag, size = 0x4, scoped, tag = 'scoped memory for tpu_custom_call.1']
    #allocation5 [shape = 's32[1]{0}', space=sflag, size = 0x4, scoped, tag = 'scoped memory for tpu_custom_call.1']
    #allocation6 [shape = 'u8[65536]{0}', space=vmem, size = 0x10000, scoped, tag = 'input window, operand 1, single buffered']
    #allocation7 [shape = 's32[1]{0}', space=sflag, size = 0x4, scoped, tag = 'scoped memory for tpu_custom_call.1']
    #allocation8 [shape = 'u8[4096]{0}', space=vmem, size = 0x1000, scoped, tag = 'output window, operand 0, single buffered']
    %8 = vsyncpa [#allocation4], 0
    %9 = vsyncpa [#allocation7], 0
    %10 = vsyncpa [#allocation5], 0
    // Predicated region
    $region2: #{tpu_custom_call.1} parent=1 // pred_check
      _
    $region3: #{tpu_custom_call.1} parent=1 // pred_check_branch
      %12 = sbr.rel (0) target = $region5
    $region4: #{tpu_custom_call.1} parent=1 // pred_region
      %s14 = ssub.s32 256, 256
      %15 = vsyncadd [#allocation4], %s14
      %s17 = sshll.u32 [#allocation3], 4
      %s18 = int_to_ptr.vmem [resolvable:$true] %s17
      %20 = dma.hbm_to_vmem [thread:$0]  %s0, 256, %s18, [#allocation4]
    $region5: #{tpu_custom_call.1} parent=1 // pred_fallthru
      _
    // Predicated region
    $region6: #{tpu_custom_call.1} parent=1 // pred_check
      _
    $region7: #{tpu_custom_call.1} parent=1 // pred_check_branch
      %22 = sbr.rel (0) target = $region9
    $region8: #{tpu_custom_call.1} parent=1 // pred_region
      %s24 = ssub.s32 2048, 2048
      %25 = vsyncadd [#allocation7], %s24
      %s26 = sshll.u32 [#allocation6], 4
      %s27 = int_to_ptr.vmem [resolvable:$true] %s26
      %32 = dma.hbm_to_vmem [thread:$0]  %s1, 2048, %s27, [#allocation7], 64, 64, 4
    $region9: #{tpu_custom_call.1} parent=1 // pred_fallthru
      _
    // Predicated region
    $region10: #{tpu_custom_call.1} parent=1 // pred_check
      _
    $region11: #{tpu_custom_call.1} parent=1 // pred_check_branch
      %34 = sbr.rel (0) target = $region13
    $region12: #{tpu_custom_call.1} parent=1 // pred_region
      _
    $region13: #{tpu_custom_call.1} parent=1 // pred_fallthru
      _
    // Predicated region
    $region14: #{tpu_custom_call.1} parent=1 // pred_check
      _
    $region15: #{tpu_custom_call.1} parent=1 // pred_check_branch
      %36 = sbr.rel (0) target = $region17
    $region16: #{tpu_custom_call.1} parent=1 // pred_region
      %37 = dma.done [#allocation4], 256
    $region17: #{tpu_custom_call.1} parent=1 // pred_fallthru
      _
    // Predicated region
    $region18: #{tpu_custom_call.1} parent=1 // pred_check
      _
    $region19: #{tpu_custom_call.1} parent=1 // pred_check_branch
      %39 = sbr.rel (0) target = $region21
    $region20: #{tpu_custom_call.1} parent=1 // pred_region
      %40 = dma.done [#allocation7], 2048
    $region21: #{tpu_custom_call.1} parent=1 // pred_fallthru
      _
    %p42 = scmp.eq.s32.totalorder 0, 0
    // Predicated region
    $region22: #{tpu_custom_call.1} parent=1 // pred_check
      %p43 = pneg %p42
    $region23: #{tpu_custom_call.1} parent=1 // pred_check_branch
      %45 = sbr.rel (%p43) target = $region25
    $region24: #{tpu_custom_call.1} parent=1 // pred_region
      %46 = vst [vmem:[#allocation2] sm:$0xff] 0.0
    $region25: #{tpu_custom_call.1} parent=1 // pred_fallthru
      _
    %v47 = vld [vmem:[#allocation2] sm:$0xff]
    %v48 = vld [vmem:[#allocation3] sm:$0xff]
    %v49 = vld [vmem:[#allocation3 + $0x8] sm:$0xff]
    %v50 = vpack.c.bf16 %v48, %v48
    %v51 = vpack.c.bf16 %v49, %v49
    %v52 = vld [vmem:[#allocation6] sm:$0xf]
    %v53 = vld [vmem:[#allocation6 + $0x4] sm:$0xf]
    %v54 = vld [vmem:[#allocation6 + $0x8] sm:$0xf]
    %v55 = vld [vmem:[#allocation6 + $0xc] sm:$0xf]
    %v56 = vld [vmem:[#allocation6 + $0x10] sm:$0xf]
    %v57 = vld [vmem:[#allocation6 + $0x14] sm:$0xf]
    %v58 = vld [vmem:[#allocation6 + $0x18] sm:$0xf]
    %v59 = vld [vmem:[#allocation6 + $0x1c] sm:$0xf]
    %v60 = vld [vmem:[#allocation6 + $0x20] sm:$0xf]
    %v61 = vld [vmem:[#allocation6 + $0x24] sm:$0xf]
    %v62 = vld [vmem:[#allocation6 + $0x28] sm:$0xf]
    %v63 = vld [vmem:[#allocation6 + $0x2c] sm:$0xf]
    %v64 = vld [vmem:[#allocation6 + $0x30] sm:$0xf]
    %v65 = vld [vmem:[#allocation6 + $0x34] sm:$0xf]
    %v66 = vld [vmem:[#allocation6 + $0x38] sm:$0xf]
    %v67 = vld [vmem:[#allocation6 + $0x3c] sm:$0xf]
    %v68 = vld [vmem:[#allocation6 + $0x40] sm:$0xf]
    %v69 = vld [vmem:[#allocation6 + $0x44] sm:$0xf]
    %v70 = vld [vmem:[#allocation6 + $0x48] sm:$0xf]
    %v71 = vld [vmem:[#allocation6 + $0x4c] sm:$0xf]
    %v72 = vld [vmem:[#allocation6 + $0x50] sm:$0xf]
    %v73 = vld [vmem:[#allocation6 + $0x54] sm:$0xf]
    %v74 = vld [vmem:[#allocation6 + $0x58] sm:$0xf]
    %v75 = vld [vmem:[#allocation6 + $0x5c] sm:$0xf]
    %v76 = vld [vmem:[#allocation6 + $0x60] sm:$0xf]
    %v77 = vld [vmem:[#allocation6 + $0x64] sm:$0xf]
    %v78 = vld [vmem:[#allocation6 + $0x68] sm:$0xf]
    %v79 = vld [vmem:[#allocation6 + $0x6c] sm:$0xf]
    %v80 = vld [vmem:[#allocation6 + $0x70] sm:$0xf]
    %v81 = vld [vmem:[#allocation6 + $0x74] sm:$0xf]
    %v82 = vld [vmem:[#allocation6 + $0x78] sm:$0xf]
    %v83 = vld [vmem:[#allocation6 + $0x7c] sm:$0xf]
    %v116 = vunpack.c.l.b16 %v52
    %v117 = vunpack.c.l.b16 %v53
    %v118 = vunpack.c.l.b16 %v54
    %v119 = vunpack.c.l.b16 %v55
    %v120 = vunpack.c.l.b16 %v56
    %v121 = vunpack.c.l.b16 %v57
    %v122 = vunpack.c.l.b16 %v58
    %v123 = vunpack.c.l.b16 %v59
    %v124 = vunpack.c.l.b16 %v60
    %v125 = vunpack.c.l.b16 %v61
    %v126 = vunpack.c.l.b16 %v62
    %v127 = vunpack.c.l.b16 %v63
    %v128 = vunpack.c.l.b16 %v64
    %v129 = vunpack.c.l.b16 %v65
    %v130 = vunpack.c.l.b16 %v66
    %v131 = vunpack.c.l.b16 %v67
    %v132 = vunpack.c.l.b16 %v68
    %v133 = vunpack.c.l.b16 %v69
    %v134 = vunpack.c.l.b16 %v70
    %v135 = vunpack.c.l.b16 %v71
    %v136 = vunpack.c.l.b16 %v72
    %v137 = vunpack.c.l.b16 %v73
    %v138 = vunpack.c.l.b16 %v74
    %v139 = vunpack.c.l.b16 %v75
    %v140 = vunpack.c.l.b16 %v76
    %v141 = vunpack.c.l.b16 %v77
    %v142 = vunpack.c.l.b16 %v78
    %v143 = vunpack.c.l.b16 %v79
    %v144 = vunpack.c.l.b16 %v80
    %v145 = vunpack.c.l.b16 %v81
    %v146 = vunpack.c.l.b16 %v82
    %v147 = vunpack.c.l.b16 %v83
    %v148 = vpack.c.b16 %v117, %v116
    %v149 = vpack.c.b16 %v119, %v118
    %v150 = vpack.c.b16 %v121, %v120
    %v151 = vpack.c.b16 %v123, %v122
    %v152 = vpack.c.b16 %v125, %v124
    %v153 = vpack.c.b16 %v127, %v126
    %v154 = vpack.c.b16 %v129, %v128
    %v155 = vpack.c.b16 %v131, %v130
    %v156 = vpack.c.b16 %v133, %v132
    %v157 = vpack.c.b16 %v135, %v134
    %v158 = vpack.c.b16 %v137, %v136
    %v159 = vpack.c.b16 %v139, %v138
    %v160 = vpack.c.b16 %v141, %v140
    %v161 = vpack.c.b16 %v143, %v142
    %v162 = vpack.c.b16 %v145, %v144
    %v163 = vpack.c.b16 %v147, %v146
    %180 = vmatprep.subr.bf16.mxu0 0
    %181 = vmatpush1.bf16.msra.mxu0 %v148
    %182 = vmatprep.subr.bf16.mxu0 0
    %183 = vmatpush1.bf16.msra.mxu0 %v149
    %184 = vmatprep.subr.bf16.mxu0 0
    %185 = vmatpush1.bf16.msra.mxu0 %v150
    %186 = vmatprep.subr.bf16.mxu0 0
    %187 = vmatpush1.bf16.msra.mxu0 %v151
    %188 = vmatprep.subr.bf16.mxu0 0
    %189 = vmatpush1.bf16.msra.mxu0 %v152
    %190 = vmatprep.subr.bf16.mxu0 0
    %191 = vmatpush1.bf16.msra.mxu0 %v153
    %192 = vmatprep.subr.bf16.mxu0 0
    %193 = vmatpush1.bf16.msra.mxu0 %v154
    %194 = vmatprep.subr.bf16.mxu0 0
    %195 = vmatpush1.bf16.msra.mxu0 %v155
    %196 = vmatprep.subr.bf16.mxu0 0
    %197 = vmatpush1.bf16.msra.mxu0 %v156
    %198 = vmatprep.subr.bf16.mxu0 0
    %199 = vmatpush1.bf16.msra.mxu0 %v157
    %200 = vmatprep.subr.bf16.mxu0 0
    %201 = vmatpush1.bf16.msra.mxu0 %v158
    %202 = vmatprep.subr.bf16.mxu0 0
    %203 = vmatpush1.bf16.msra.mxu0 %v159
    %204 = vmatprep.subr.bf16.mxu0 0
    %205 = vmatpush1.bf16.msra.mxu0 %v160
    %206 = vmatprep.subr.bf16.mxu0 0
    %207 = vmatpush1.bf16.msra.mxu0 %v161
    %208 = vmatprep.subr.bf16.mxu0 0
    %209 = vmatpush1.bf16.msra.mxu0 %v162
    %210 = vmatprep.subr.bf16.mxu0 0
    %211 = vmatpush1.bf16.msra.mxu0 %v163
    %212 = vmatprep.mubr.bf16.mxu0 %v51
    %213 = vmatmul.mubr.bf16.gmra.mrb[0].mxu0 %v50
    %v214 = vpop.f32.mrb[0].mxu0
    %v215 = vadd.f32 0.0, %v214
    %v216 = vpop.f32.mrb[0].mxu0
    %v217 = vpop.f32.mrb[0].mxu0
    %v218 = vpop.f32.mrb[0].mxu0
    %219 = vdwg.mxu0
    %v220 = vadd.f32 %v47, %v215
    %221 = vst [vmem:[#allocation2] sm:$0xff] %v220
    // Predicated region
    $region26: #{tpu_custom_call.1} parent=1 // pred_check
      %p222 = pneg %p42
    $region27: #{tpu_custom_call.1} parent=1 // pred_check_branch
      %224 = sbr.rel (%p222) target = $region29
    $region28: #{tpu_custom_call.1} parent=1 // pred_region
      %v225 = vld [vmem:[#allocation2] sm:$0xff]
      %v226 = vld [vmem:[%s2] sm:$0x1]
      %v228 = vlaneseq
      %v229 = vshrl.u32 %v228, 7
      %v230 = vsub.s32 0, %v229
      %v231 = vrot.slane %v226, %v230
      %v233 = vadd.f32 %v225, %v231
      %234 = vst [vmem:[#allocation8] sm:$0xff] %v233
    $region29: #{tpu_custom_call.1} parent=1 // pred_fallthru
      _
    // Predicated region
    $region30: #{tpu_custom_call.1} parent=1 // pred_check
      _
    $region31: #{tpu_custom_call.1} parent=1 // pred_check_branch
      %236 = sbr.rel (0) target = $region33
    $region32: #{tpu_custom_call.1} parent=1 // pred_region
      %s238 = ssub.s32 128, 128
      %239 = vsyncadd [#allocation5], %s238
      %s241 = sshll.u32 [#allocation8], 4
      %s242 = int_to_ptr.vmem [resolvable:$true] %s241
      %244 = dma.vmem_to_hbm [thread:$0]  %s242, 128, %s3, [#allocation5]
    $region33: #{tpu_custom_call.1} parent=1 // pred_fallthru
      _
    // Predicated region
    $region34: #{tpu_custom_call.1} parent=1 // pred_check
      _
    $region35: #{tpu_custom_call.1} parent=1 // pred_check_branch
      %246 = sbr.rel (0) target = $region37
    $region36: #{tpu_custom_call.1} parent=1 // pred_region
      %247 = dma.done [#allocation5], 128
    $region37: #{tpu_custom_call.1} parent=1 // pred_fallthru
      _
    %248 = vsyncpa [#allocation4], 1
    %249 = vsyncpa [#allocation7], 1
    %250 = vsyncpa [#allocation5], 1

</llo_original>
